<compile_context>
chip_gen: v7x
topology: tpu7x:2x2x1
jax: 0.10.0
libtpu: 0.0.40
codegen_flags: <defaults>
</compile_context>

<pallas_src>
import jax
import jax.numpy as jnp
from jax.experimental import pallas as pl
from jax.experimental.pallas import tpu as pltpu

# ---- static conv config (the **kwargs chosen for BasicConv's Conv2d) ----
KH, KW = 3, 3
STRIDE = 1
PAD = 1
LANE = 128  # TPU lane width


def conv_relu_kernel(x_ref, w_ref, o_ref):
    """One (batch, H-tile) block of Conv3x3(s=1, p=1, bias=False) + ReLU.

    x_ref: (Hp, W, KW*Cin)    bf16, kw-expanded + row-padded image of batch n
    w_ref: (KH, KW*Cin, Coutp) bf16, Cout zero-padded to a lane multiple
    o_ref: (TH, W, Coutp)      f32, lane-dense output tile
    """
    TH, W, Coutp = o_ref.shape
    Kc = x_ref.shape[-1]                     # KW * Cin
    h = pl.program_id(1)
    row0 = pl.multiple_of(h * TH, TH)

    # 3 MXU matmuls (one per kh tap row), K = KW*Cin each, accumulated in a
    # local value -> a single fused-ReLU store per tile.
    acc = None
    for kh in range(KH):
        band = x_ref[pl.ds(row0 + kh, TH), :, :].reshape(TH * W, Kc)
        contrib = jnp.dot(band, w_ref[kh], preferred_element_type=jnp.float32)
        acc = contrib if acc is None else acc + contrib

    out = jnp.maximum(acc, 0.0)              # fused ReLU, f32
    o_ref[...] = out.reshape(TH, W, Coutp).astype(o_ref.dtype)


def _pick_tile_h(H, W, Coutp):
    """Largest divisor of H whose acc + 2 output buffers stay within ~6 MiB."""
    budget = 6 << 20
    best = 1
    for th in range(1, H + 1):
        if H % th == 0 and 3 * th * W * Coutp * 4 <= budget:
            best = th
    return best


def _vmem_cap_bytes():
    try:
        info = pltpu.get_tpu_info()
        return int(getattr(info, "vmem_capacity_bytes", 64 << 20))
    except Exception:
        return 64 << 20


def basic_conv_forward(x_nchw, weight_oihw, *, compute_dtype=jnp.bfloat16):
    """BasicConv.forward: Conv2d(3x3, s=1, p=1, bias=False) + ReLU (bn unused).

    x_nchw:      (N, Cin, H, W)      float32
    weight_oihw: (Cout, Cin, KH, KW) float32 (PyTorch Conv2d layout)
    returns:     (N, Cout, H, W)     float32
    """
    N, Cin, H, W = x_nchw.shape
    Cout = weight_oihw.shape[0]
    assert weight_oihw.shape == (Cout, Cin, KH, KW)
    assert STRIDE == 1, "kernel written for stride=1"

    Coutp = ((Cout + LANE - 1) // LANE) * LANE   # lane-dense output channels
    # TODO(synk): round Coutp to 256 on v6e/v7x (256-wide MXU) when Cout > 128;
    # for Cout << 128 pack (W, Cout) onto the lane axis instead of padding 16x.

    TH = _pick_tile_h(H, W, Coutp)

    # ---- host-side layout glue (NCHW -> NHWC, pad, kw im2col, bf16 cast) ----
    # TODO(synk): keep the whole network NHWC/bf16 and pre-pack weights once so
    # these extra HBM passes disappear from the hot path.
    x = jnp.transpose(x_nchw, (0, 2, 3, 1)).astype(compute_dtype)
    x = jnp.pad(x, ((0, 0), (PAD, PAD), (PAD, PAD), (0, 0)))
    Hp = H + 2 * PAD
    # Fold the 3 kw taps into the channel axis: (N, Hp, W, KW*Cin), last-dim
    # order (kw, cin).  Inside the kernel a tap is then just an aligned row
    # slice -- no unaligned sublane slices and 3x larger MXU contraction.
    x = jnp.concatenate([x[:, :, kw:kw + W, :] for kw in range(KW)], axis=-1)
    Kc = KW * Cin

    # (Cout, Cin, KH, KW) -> (KH, KW*Cin, Coutp); padded columns are zero so
    # the padded output channels are exactly 0 (and stay 0 through ReLU).
    w = jnp.transpose(weight_oihw, (2, 3, 1, 0)).reshape(KH, Kc, Cout)
    w = w.astype(compute_dtype)
    if Coutp != Cout:
        w = jnp.pad(w, ((0, 0), (0, 0), (0, Coutp - Cout)))

    # ---- VMEM budget: cap derived from the actual chip (64 MiB on v7x). ----
    in_bytes = jnp.dtype(compute_dtype).itemsize
    needed = int(
        2 * Hp * W * Kc * in_bytes            # double-buffered per-image input
        + 2 * KH * Kc * Coutp * in_bytes      # weights (pipeline double-buffers)
        + 2 * TH * W * Coutp * 4              # double-buffered f32 output tile
        + 2 * TH * W * Coutp * 4              # accumulator / matmul temporaries
        + (4 << 20))                          # headroom
    cap = min((_vmem_cap_bytes() * 7) // 8, 96 << 20)
    vmem_bytes = int(min(max(needed, 32 << 20), cap))
    # TODO(synk): when 2*Hp*W*Kc*in_bytes no longer fits (large H*W*Cin on
    # v7x's 64 MiB VMEM), switch the input to halo-tiled manual DMA
    # (memory_space=pl.ANY + make_async_copy of TH+2 rows per step) instead of
    # whole-image residency / default double-buffering.

    cost = pl.CostEstimate(
        flops=2 * N * H * W * KH * Kc * Coutp,
        transcendentals=0,
        bytes_accessed=int(N * Hp * W * Kc * in_bytes
                           + KH * Kc * Coutp * in_bytes
                           + N * H * W * Coutp * 4),
    )

    out_nhwc = pl.pallas_call(
        conv_relu_kernel,
        out_shape=jax.ShapeDtypeStruct((N, H, W, Coutp), jnp.float32),
        grid=(N, H // TH),
        in_specs=[
            # Whole kw-expanded image of batch n: its block index depends only
            # on n, so Pallas fetches it once per image and reuses it across
            # all H tiles.
            pl.BlockSpec((None, Hp, W, Kc), lambda n, h: (n, 0, 0, 0)),
            pl.BlockSpec((KH, Kc, Coutp), lambda n, h: (0, 0, 0)),
        ],
        out_specs=pl.BlockSpec((None, TH, W, Coutp), lambda n, h: (n, h, 0, 0)),
        compiler_params=pltpu.CompilerParams(
            # N leads so a megacore split lands on the batch axis first and the
            # two v7x cores do not both DMA the same image.
            dimension_semantics=("parallel", "parallel"),
            vmem_limit_bytes=vmem_bytes),
        cost_estimate=cost,
    )(x, w)

    # Drop lane padding, return NCHW to match PyTorch semantics exactly.
    return jnp.transpose(out_nhwc[..., :Cout], (0, 3, 1, 2))


if __name__ == "__main__":
    key = jax.random.PRNGKey(0)
    kx, kw_key = jax.random.split(key)

    N, Cin, Cout, H, W = 2, 4, 8, 16, 16
    x = jax.random.normal(kx, (N, Cin, H, W), dtype=jnp.float32)
    # Deterministic synthetic weights (PyTorch Conv2d weight shape, bias=False).
    weight = jax.random.normal(kw_key, (Cout, Cin, KH, KW), dtype=jnp.float32) * 0.1

    out = basic_conv_forward(x, weight)
    out = jax.block_until_ready(out)

    # Reference: XLA conv + relu on the same bf16-cast operands with f32
    # accumulation, so the comparison isolates kernel correctness from the
    # deliberate bf16 compute-dtype choice.
    xb = x.astype(jnp.bfloat16)
    wb = weight.astype(jnp.bfloat16)
    ref = jax.lax.conv_general_dilated(
        xb, wb,
        window_strides=(STRIDE, STRIDE),
        padding=((PAD, PAD), (PAD, PAD)),
        dimension_numbers=("NCHW", "OIHW", "NCHW"),
        preferred_element_type=jnp.float32,
    )
    ref = jnp.maximum(ref, 0.0)

    assert out.shape == (N, Cout, H, W)
    assert out.dtype == jnp.float32
    assert jnp.allclose(out, ref, atol=1e-2, rtol=1e-2), float(
        jnp.max(jnp.abs(out - ref)))

    print("KERNEL_OK")
</pallas_src>

<mosaic_0001>
module attributes {stable_mosaic.version = 11 : i64} {
  func.func @conv_relu_kernel(%arg0: i32, %arg1: i32, %arg2: memref<1x18x16x12xbf16, #tpu.memory_space<vmem>>, %arg3: memref<3x12x128xbf16, #tpu.memory_space<vmem>>, %arg4: memref<1x16x16x128xf32, #tpu.memory_space<vmem>>) attributes {dimension_semantics = [#tpu.dimension_semantics<parallel>, #tpu.dimension_semantics<parallel>], iteration_bounds = array<i64: 2, 1>, scalar_prefetch = 0 : i64, scratch_operands = 0 : i64, tpu.core_type = #tpu.core_type<tc>, window_params = [{transform_indices = @transform_0, window_bounds = array<i64: 1, 18, 16, 12>}, {pipeline_mode = #tpu.pipeline_mode<synchronous>, transform_indices = @transform_1, window_bounds = array<i64: 3, 12, 128>}, {transform_indices = @transform_2, window_bounds = array<i64: 1, 16, 16, 128>}]} {
    %c16_i32 = arith.constant 16 : i32
    %0 = arith.muli %arg1, %c16_i32 : i32
    %1 = tpu.assume_multiple %0, 16 : i32
    %c0_i32 = arith.constant 0 : i32
    %2 = arith.addi %1, %c0_i32 : i32
    %c0 = arith.constant 0 : index
    %3 = arith.index_cast %2 : i32 to index
    %c0_0 = arith.constant 0 : index
    %c0_1 = arith.constant 0 : index
    %4 = vector.load %arg2[%c0, %3, %c0_0, %c0_1] : memref<1x18x16x12xbf16, #tpu.memory_space<vmem>>, vector<1x16x16x12xbf16>
    %5 = vector.shape_cast %4 : vector<1x16x16x12xbf16> to vector<16x16x12xbf16>
    %6 = vector.shape_cast %5 : vector<16x16x12xbf16> to vector<256x12xbf16>
    %c0_2 = arith.constant 0 : index
    %c0_3 = arith.constant 0 : index
    %c0_4 = arith.constant 0 : index
    %7 = vector.load %arg3[%c0_2, %c0_3, %c0_4] : memref<3x12x128xbf16, #tpu.memory_space<vmem>>, vector<1x12x128xbf16>
    %8 = vector.shape_cast %7 : vector<1x12x128xbf16> to vector<12x128xbf16>
    %cst = arith.constant dense<0.000000e+00> : vector<256x128xf32>
    %9 = tpu.matmul %6, %8, %cst {dimension_numbers = #tpu.dot_dimension_numbers<[1], [0], [0], [1], [0, 0, 1, 1], [], []>} : vector<256x12xbf16>, vector<12x128xbf16>, vector<256x128xf32> -> vector<256x128xf32>
    %c1_i32 = arith.constant 1 : i32
    %10 = arith.addi %1, %c1_i32 : i32
    %c0_5 = arith.constant 0 : index
    %11 = arith.index_cast %10 : i32 to index
    %c0_6 = arith.constant 0 : index
    %c0_7 = arith.constant 0 : index
    %12 = vector.load %arg2[%c0_5, %11, %c0_6, %c0_7] : memref<1x18x16x12xbf16, #tpu.memory_space<vmem>>, vector<1x16x16x12xbf16>
    %13 = vector.shape_cast %12 : vector<1x16x16x12xbf16> to vector<16x16x12xbf16>
    %14 = vector.shape_cast %13 : vector<16x16x12xbf16> to vector<256x12xbf16>
    %c1 = arith.constant 1 : index
    %c0_8 = arith.constant 0 : index
    %c0_9 = arith.constant 0 : index
    %15 = vector.load %arg3[%c1, %c0_8, %c0_9] : memref<3x12x128xbf16, #tpu.memory_space<vmem>>, vector<1x12x128xbf16>
    %16 = vector.shape_cast %15 : vector<1x12x128xbf16> to vector<12x128xbf16>
    %cst_10 = arith.constant dense<0.000000e+00> : vector<256x128xf32>
    %17 = tpu.matmul %14, %16, %cst_10 {dimension_numbers = #tpu.dot_dimension_numbers<[1], [0], [0], [1], [0, 0, 1, 1], [], []>} : vector<256x12xbf16>, vector<12x128xbf16>, vector<256x128xf32> -> vector<256x128xf32>
    %18 = arith.addf %9, %17 : vector<256x128xf32>
    %c2_i32 = arith.constant 2 : i32
    %19 = arith.addi %1, %c2_i32 : i32
    %c0_11 = arith.constant 0 : index
    %20 = arith.index_cast %19 : i32 to index
    %c0_12 = arith.constant 0 : index
    %c0_13 = arith.constant 0 : index
    %21 = vector.load %arg2[%c0_11, %20, %c0_12, %c0_13] : memref<1x18x16x12xbf16, #tpu.memory_space<vmem>>, vector<1x16x16x12xbf16>
    %22 = vector.shape_cast %21 : vector<1x16x16x12xbf16> to vector<16x16x12xbf16>
    %23 = vector.shape_cast %22 : vector<16x16x12xbf16> to vector<256x12xbf16>
    %c2 = arith.constant 2 : index
    %c0_14 = arith.constant 0 : index
    %c0_15 = arith.constant 0 : index
    %24 = vector.load %arg3[%c2, %c0_14, %c0_15] : memref<3x12x128xbf16, #tpu.memory_space<vmem>>, vector<1x12x128xbf16>
    %25 = vector.shape_cast %24 : vector<1x12x128xbf16> to vector<12x128xbf16>
    %cst_16 = arith.constant dense<0.000000e+00> : vector<256x128xf32>
    %26 = tpu.matmul %23, %25, %cst_16 {dimension_numbers = #tpu.dot_dimension_numbers<[1], [0], [0], [1], [0, 0, 1, 1], [], []>} : vector<256x12xbf16>, vector<12x128xbf16>, vector<256x128xf32> -> vector<256x128xf32>
    %27 = arith.addf %18, %26 : vector<256x128xf32>
    %cst_17 = arith.constant 0.000000e+00 : f32
    %28 = vector.broadcast %cst_17 : f32 to vector<256x128xf32>
    %29 = arith.maximumf %27, %28 : vector<256x128xf32>
    %30 = vector.shape_cast %29 : vector<256x128xf32> to vector<16x16x128xf32>
    %c0_18 = arith.constant 0 : index
    %c0_19 = arith.constant 0 : index
    %c0_20 = arith.constant 0 : index
    %c0_21 = arith.constant 0 : index
    %31 = vector.load %arg4[%c0_18, %c0_19, %c0_20, %c0_21] : memref<1x16x16x128xf32, #tpu.memory_space<vmem>>, vector<1x16x16x128xf32>
    %32 = vector.shape_cast %31 : vector<1x16x16x128xf32> to vector<16x16x128xf32>
    %33 = vector.shape_cast %30 : vector<16x16x128xf32> to vector<1x16x16x128xf32>
    tpu.vector_store %arg4[%c0_18, %c0_19, %c0_20, %c0_21], %33 {strides = array<i32>} : memref<1x16x16x128xf32, #tpu.memory_space<vmem>>, vector<1x16x16x128xf32>,
    return
  }
  func.func @transform_0(%arg0: i32, %arg1: i32) -> (i32, i32, i32, i32) {
    %c0_i32 = arith.constant 0 : i32
    %c0_i32_0 = arith.constant 0 : i32
    %c0_i32_1 = arith.constant 0 : i32
    %c0_i32_2 = arith.constant 0 : i32
    return %arg0, %c0_i32, %c0_i32_0, %c0_i32_1 : i32, i32, i32, i32
  }
  func.func @transform_1(%arg0: i32, %arg1: i32) -> (i32, i32, i32) {
    %c0_i32 = arith.constant 0 : i32
    %c0_i32_0 = arith.constant 0 : i32
    %c0_i32_1 = arith.constant 0 : i32
    %c0_i32_2 = arith.constant 0 : i32
    return %c0_i32, %c0_i32_0, %c0_i32_1 : i32, i32, i32
  }
  func.func @transform_2(%arg0: i32, %arg1: i32) -> (i32, i32, i32, i32) {
    %c0_i32 = arith.constant 0 : i32
    %c0_i32_0 = arith.constant 0 : i32
    %c0_i32_1 = arith.constant 0 : i32
    return %arg0, %arg1, %c0_i32, %c0_i32_0 : i32, i32, i32, i32
  }
}

</mosaic_0001>

<llo_original>
// kernel: tpu_custom_call.1
$region0: #{tpu_custom_call.1}
  #allocation0 [shape = 'u32[]', space=smem, size = 0x4, offset = 0x4, fixed_abs, tag = 'smem constant byte address 0x4 - core index']
  #allocation1 [shape = 'u32[144,128]{1,0:T(1,128)}', space=vmem, size = 0x12000, scoped, tag = 'internal scratch']
  %s0 = inlined_call_operand.vmem [shape: bf16[2,18,16,12], index: 0, kind: input, shape index: {}]
  %s1 = inlined_call_operand.vmem [shape: bf16[3,12,128], index: 1, kind: input, shape index: {}]
  %s2 = inlined_call_operand.hbm [shape: f32[2,16,16,128], index: 2, kind: output, shape index: {}]
  %s3 = sld [smem:[#allocation0]]
  $region41: #{tpu_custom_call.1} parent=0
    _
  %s5 = ssub.s32 1, %s3
  %s6 = scalar_select 0, %s5, %s3
  $region1: #{tpu_custom_call.1} parent=0
    #allocation2 [shape = 'u8[262144]{0}', space=vmem, size = 0x40000, scoped, tag = 'output window, operand 0']
    #allocation3 [shape = 's32[2]{0}', space=sflag, size = 0x8, scoped, tag = 'scoped memory for tpu_custom_call.1']
    %7 = vsyncpa [#allocation3], 0
    %s8 = scalar_lea.sflag [#allocation3], 1
    %9 = vsyncpa %s8, 0
    loop: start=0, step=1, limit=4
    $region2: #{tpu_custom_call.1} parent=1 // loop_pre_header
      _
    $region3: #{tpu_custom_call.1} parent=1 // loop_header
      %s11 = sphi 0, %s15
      %p12 = scmp.ge.s32.totalorder %s11, 4
      %s18 = sphi 0, %s30
      %s19 = sphi 0, %s26
      %s20 = sphi 0, %s18
      %s21 = sphi 0, %s19
      %s22 = sphi 0, %s20
      %s23 = sphi 0, %s21
      %s33 = sphi 0, %s35
      %s36 = sphi 0, %s33
      %s37 = sphi 0, %s36
      %s53 = sphi 0, %s37
      %s57 = sphi 0, %s57
      %s59 = sphi 0, %s57
      %s60 = sphi 0, %s59
      %s74 = sphi 0, %s60
      %s82 = sphi 0, %s84
      %s85 = sphi 0, %s82
      %s86 = sphi 0, %s85
      %s102 = sphi 0, %s86
    $region4: #{tpu_custom_call.1} parent=1 // loop_header_branch
      %14 = sbr.rel (%p12) target = $region8
    $region5: #{tpu_custom_call.1} parent=1 // loop_body
      %s16 = ssub.s32 %s11, 1
      %s17 = ssub.s32 %s11, 2
      %s24 = sadd.s32 1, %s19
      %p25 = scmp.ge.s32.totalorder %s24, 1
      %s26 = scalar_select %p25, 0, %s24
      %s27 = sadd.s32 1, %s18
      %s28 = scalar_select %p25, %s27, %s18
      %p29 = scmp.ge.s32.totalorder %s28, 2
      %s30 = scalar_select %p29, 0, %s28
      %s31 = ssub.s32 %s18, %s30
      %p32 = scmp.eq.s32.totalorder %s31, 0
      %s34 = sadd.s32 %s33, 1
      %s35 = scalar_select %p32, %s33, %s34
      %p38 = pneg %p32
      %p39 = scmp.eq.s32.totalorder %s11, 1
      %p40 = por %p38, %p39
      %p41 = scmp.ne.s32.totalorder %s33, %s36
      %p42 = scmp.eq.s32.totalorder %s11, 0
      %p43 = por %p41, %p42
      %p44 = scmp.ne.s32.totalorder %s33, %s36
      %p45 = scmp.eq.s32.totalorder %s16, 1
      %p46 = por %p44, %p45
      %p47 = scmp.ne.s32.totalorder %s36, %s37
      %p48 = scmp.eq.s32.totalorder %s16, 0
      %p49 = por %p47, %p48
      %p50 = scmp.ne.s32.totalorder %s36, %s37
      %p51 = scmp.eq.s32.totalorder %s17, 1
      %p52 = por %p50, %p51
      %p54 = scmp.ne.s32.totalorder %s37, %s53
      %p55 = scmp.eq.s32.totalorder %s17, 0
      %p56 = por %p54, %p55
      %s58 = sadd.s32 %s57, 1
      %p61 = scmp.eq.s32.totalorder %s11, 1
      %p62 = scmp.ne.s32.totalorder %s57, %s59
      %p63 = scmp.eq.s32.totalorder %s11, 0
      %p64 = por %p62, %p63
      %p65 = scmp.ne.s32.totalorder %s57, %s59
      %p66 = scmp.eq.s32.totalorder %s16, 1
      %p67 = por %p65, %p66
      %p68 = scmp.ne.s32.totalorder %s59, %s60
      %p69 = scmp.eq.s32.totalorder %s16, 0
      %p70 = por %p68, %p69
      %p71 = scmp.ne.s32.totalorder %s59, %s60
      %p72 = scmp.eq.s32.totalorder %s17, 1
      %p73 = por %p71, %p72
      %p75 = scmp.ne.s32.totalorder %s60, %s74
      %p76 = scmp.eq.s32.totalorder %s17, 0
      %p77 = por %p75, %p76
      %s78 = ssub.s32 %s18, %s30
      %s79 = ssub.s32 %s19, %s26
      %s80 = sor.u32 %s78, %s79
      %p81 = scmp.eq.s32.totalorder %s80, 0
      %s83 = sadd.s32 %s82, 1
      %s84 = scalar_select %p81, %s82, %s83
      %p87 = pneg %p81
      %p88 = scmp.eq.s32.totalorder %s11, 1
      %p89 = por %p87, %p88
      %p90 = scmp.ne.s32.totalorder %s82, %s85
      %p91 = scmp.eq.s32.totalorder %s11, 0
      %p92 = por %p90, %p91
      %p93 = scmp.ne.s32.totalorder %s82, %s85
      %p94 = scmp.eq.s32.totalorder %s16, 1
      %p95 = por %p93, %p94
      %p96 = scmp.ne.s32.totalorder %s85, %s86
      %p97 = scmp.eq.s32.totalorder %s16, 0
      %p98 = por %p96, %p97
      %p99 = scmp.ne.s32.totalorder %s85, %s86
      %p100 = scmp.eq.s32.totalorder %s17, 1
      %p101 = por %p99, %p100
      %p103 = scmp.ne.s32.totalorder %s86, %s102
      %p104 = scmp.eq.s32.totalorder %s17, 0
      %p105 = por %p103, %p104
      %p106 = scmp.le.s32.totalorder 1, %s11
      %p107 = scmp.lt.s32.totalorder %s11, 3
      %p108 = pnand %p106, %p107
      %p109 = pneg %p108
      // Predicated region
      $region9: #{tpu_custom_call.1} parent=5 // pred_check
        _
      $region10: #{tpu_custom_call.1} parent=5 // pred_check_branch
        %111 = sbr.rel (%p108) target = $region12
      $region11: #{tpu_custom_call.1} parent=5 // pred_region
        %s112 = ssub.s32 %s11, 1
        // Predicated region
        $region13: #{tpu_custom_call.1} parent=11 // pred_check
          %p113 = pneg %p70
        $region14: #{tpu_custom_call.1} parent=11 // pred_check_branch
          %115 = sbr.rel (%p113) target = $region16
        $region15: #{tpu_custom_call.1} parent=11 // pred_region
          _
        $region16: #{tpu_custom_call.1} parent=11 // pred_fallthru
          _
      $region12: #{tpu_custom_call.1} parent=5 // pred_fallthru
        _
      %p116 = scmp.lt.s32.totalorder %s11, 2
      // Predicated region
      $region17: #{tpu_custom_call.1} parent=5 // pred_check
        %p117 = pneg %p116
      $region18: #{tpu_custom_call.1} parent=5 // pred_check_branch
        %119 = sbr.rel (%p117) target = $region20
      $region19: #{tpu_custom_call.1} parent=5 // pred_region
        // Predicated region
        $region21: #{tpu_custom_call.1} parent=19 // pred_check
          %p120 = pneg %p43
        $region22: #{tpu_custom_call.1} parent=19 // pred_check_branch
          %122 = sbr.rel (%p120) target = $region24
        $region23: #{tpu_custom_call.1} parent=19 // pred_region
          %p123 = scmp.lt.s32.totalorder %s18, 1
          %s124 = scalar_select %p123, %s18, 1
          %s125 = smul.addr %s124, 36
          %s126 = smul.addr %s125, 4
          %s127 = scalar_lea.vmem %s0, %s126
        $region24: #{tpu_custom_call.1} parent=19 // pred_fallthru
          _
      $region20: #{tpu_custom_call.1} parent=5 // pred_fallthru
        _
      %p128 = scmp.le.s32.totalorder 1, %s11
      %p129 = scmp.lt.s32.totalorder %s11, 3
      %p130 = pnand %p128, %p129
      %p131 = pneg %p130
      // Predicated region
      $region25: #{tpu_custom_call.1} parent=5 // pred_check
        _
      $region26: #{tpu_custom_call.1} parent=5 // pred_check_branch
        %133 = sbr.rel (%p130) target = $region28
      $region27: #{tpu_custom_call.1} parent=5 // pred_region
        %s134 = ssub.s32 %s11, 1
        %p135 = scmp.lt.s32.totalorder %s20, 1
        %s136 = scalar_select %p135, %s20, 1
        %s137 = smul.addr %s136, 36
        %s138 = smul.addr %s137, 4
        %s139 = scalar_lea.vmem %s0, %s138
        %p140 = pneg %p49
        %p141 = pneg %p46
        %p142 = pneg %p70
        %p143 = pneg %p67
        %p144 = pneg %p98
        %p145 = pneg %p95
        %s146 = sand.u32 %s85, 1
        %s147 = scalar_lea.sflag [#allocation3], %s146
        %s148 = sand.u32 %s85, 1
        %s149 = smul.addr %s148, 256
        %s150 = scalar_lea.vmem [#allocation2], %s149
        %p151 = scmp.lt.s32.totalorder %s20, 1
        %s152 = scalar_select %p151, %s20, 1
        %s153 = smul.addr %s152, 36
        %s154 = smul.addr %s153, 4
        %s155 = scalar_lea.vmem %s0, %s154
        %s156 = smul.u32 16, %s21
        %s158 = smul.u32 %s21, 16
        %s159 = smul.u32 %s158, 2
        %s160 = smul.addr %s159, 4
        %s161 = scalar_lea.vmem %s155, %s160
        %v162 = vld [vmem:[%s161] sm:$0xf]
        %v163 = vld [vmem:[%s161 + $0x4] sm:$0xf]
        %v164 = vld [vmem:[%s161 + $0x8] sm:$0xf]
        %v165 = vld [vmem:[%s161 + $0xc] sm:$0xf]
        %v166 = vld [vmem:[%s161 + $0x10] sm:$0xf]
        %v167 = vld [vmem:[%s161 + $0x14] sm:$0xf]
        %v168 = vld [vmem:[%s161 + $0x18] sm:$0xf]
        %v169 = vld [vmem:[%s161 + $0x1c] sm:$0xf]
        %v170 = vld [vmem:[%s161 + $0x20] sm:$0xf]
        %v171 = vld [vmem:[%s161 + $0x24] sm:$0xf]
        %v172 = vld [vmem:[%s161 + $0x28] sm:$0xf]
        %v173 = vld [vmem:[%s161 + $0x2c] sm:$0xf]
        %v174 = vld [vmem:[%s161 + $0x30] sm:$0xf]
        %v175 = vld [vmem:[%s161 + $0x34] sm:$0xf]
        %v176 = vld [vmem:[%s161 + $0x38] sm:$0xf]
        %v177 = vld [vmem:[%s161 + $0x3c] sm:$0xf]
        %v178 = vld [vmem:[%s161 + $0x40] sm:$0xf]
        %v179 = vld [vmem:[%s161 + $0x44] sm:$0xf]
        %v180 = vld [vmem:[%s161 + $0x48] sm:$0xf]
        %v181 = vld [vmem:[%s161 + $0x4c] sm:$0xf]
        %v182 = vld [vmem:[%s161 + $0x50] sm:$0xf]
        %v183 = vld [vmem:[%s161 + $0x54] sm:$0xf]
        %v184 = vld [vmem:[%s161 + $0x58] sm:$0xf]
        %v185 = vld [vmem:[%s161 + $0x5c] sm:$0xf]
        %v186 = vld [vmem:[%s161 + $0x60] sm:$0xf]
        %v187 = vld [vmem:[%s161 + $0x64] sm:$0xf]
        %v188 = vld [vmem:[%s161 + $0x68] sm:$0xf]
        %v189 = vld [vmem:[%s161 + $0x6c] sm:$0xf]
        %v190 = vld [vmem:[%s161 + $0x70] sm:$0xf]
        %v191 = vld [vmem:[%s161 + $0x74] sm:$0xf]
        %v192 = vld [vmem:[%s161 + $0x78] sm:$0xf]
        %v193 = vld [vmem:[%s161 + $0x7c] sm:$0xf]
        %v194 = vld [vmem:[%s1] sm:$0xf]
        %v195 = vld [vmem:[%s1 + $0x4] sm:$0x3]
        %s196 = sadd.s32 %s158, 1
        %s197 = smul.u32 %s196, 2
        %s198 = smul.addr %s197, 4
        %s199 = scalar_lea.vmem %s155, %s198
        %v200 = vld [vmem:[%s199] sm:$0xf]
        %v201 = vld [vmem:[%s199 + $0x4] sm:$0xf]
        %v202 = vld [vmem:[%s199 + $0x8] sm:$0xf]
        %v203 = vld [vmem:[%s199 + $0xc] sm:$0xf]
        %v204 = vld [vmem:[%s199 + $0x10] sm:$0xf]
        %v205 = vld [vmem:[%s199 + $0x14] sm:$0xf]
        %v206 = vld [vmem:[%s199 + $0x18] sm:$0xf]
        %v207 = vld [vmem:[%s199 + $0x1c] sm:$0xf]
        %v208 = vld [vmem:[%s199 + $0x20] sm:$0xf]
        %v209 = vld [vmem:[%s199 + $0x24] sm:$0xf]
        %v210 = vld [vmem:[%s199 + $0x28] sm:$0xf]
        %v211 = vld [vmem:[%s199 + $0x2c] sm:$0xf]
        %v212 = vld [vmem:[%s199 + $0x30] sm:$0xf]
        %v213 = vld [vmem:[%s199 + $0x34] sm:$0xf]
        %v214 = vld [vmem:[%s199 + $0x38] sm:$0xf]
        %v215 = vld [vmem:[%s199 + $0x3c] sm:$0xf]
        %v216 = vld [vmem:[%s199 + $0x40] sm:$0xf]
        %v217 = vld [vmem:[%s199 + $0x44] sm:$0xf]
        %v218 = vld [vmem:[%s199 + $0x48] sm:$0xf]
        %v219 = vld [vmem:[%s199 + $0x4c] sm:$0xf]
        %v220 = vld [vmem:[%s199 + $0x50] sm:$0xf]
        %v221 = vld [vmem:[%s199 + $0x54] sm:$0xf]
        %v222 = vld [vmem:[%s199 + $0x58] sm:$0xf]
        %v223 = vld [vmem:[%s199 + $0x5c] sm:$0xf]
        %v224 = vld [vmem:[%s199 + $0x60] sm:$0xf]
        %v225 = vld [vmem:[%s199 + $0x64] sm:$0xf]
        %v226 = vld [vmem:[%s199 + $0x68] sm:$0xf]
        %v227 = vld [vmem:[%s199 + $0x6c] sm:$0xf]
        %v228 = vld [vmem:[%s199 + $0x70] sm:$0xf]
        %v229 = vld [vmem:[%s199 + $0x74] sm:$0xf]
        %v230 = vld [vmem:[%s199 + $0x78] sm:$0xf]
        %v231 = vld [vmem:[%s199 + $0x7c] sm:$0xf]
        %s232 = scalar_lea.vmem %s1, 8
        %v233 = vld [vmem:[%s232] sm:$0xf]
        %v234 = vld [vmem:[%s232 + $0x4] sm:$0x3]
        %v267 = vunpack.c.l.b16 %v200
        %v268 = vunpack.c.l.b16 %v201
        %v269 = vunpack.c.l.b16 %v202
        %v270 = vunpack.c.l.b16 %v203
        %v271 = vunpack.c.l.b16 %v204
        %v272 = vunpack.c.l.b16 %v205
        %v273 = vunpack.c.l.b16 %v206
        %v274 = vunpack.c.l.b16 %v207
        %v275 = vunpack.c.l.b16 %v208
        %v276 = vunpack.c.l.b16 %v209
        %v277 = vunpack.c.l.b16 %v210
        %v278 = vunpack.c.l.b16 %v211
        %v279 = vunpack.c.l.b16 %v212
        %v280 = vunpack.c.l.b16 %v213
        %v281 = vunpack.c.l.b16 %v214
        %v282 = vunpack.c.l.b16 %v215
        %v283 = vunpack.c.l.b16 %v216
        %v284 = vunpack.c.l.b16 %v217
        %v285 = vunpack.c.l.b16 %v218
        %v286 = vunpack.c.l.b16 %v219
        %v287 = vunpack.c.l.b16 %v220
        %v288 = vunpack.c.l.b16 %v221
        %v289 = vunpack.c.l.b16 %v222
        %v290 = vunpack.c.l.b16 %v223
        %v291 = vunpack.c.l.b16 %v224
        %v292 = vunpack.c.l.b16 %v225
        %v293 = vunpack.c.l.b16 %v226
        %v294 = vunpack.c.l.b16 %v227
        %v295 = vunpack.c.l.b16 %v228
        %v296 = vunpack.c.l.b16 %v229
        %v297 = vunpack.c.l.b16 %v230
        %v298 = vunpack.c.l.b16 %v231
        %v299 = vpack.c.b16 %v268, %v267
        %v300 = vpack.c.b16 %v270, %v269
        %v301 = vpack.c.b16 %v272, %v271
        %v302 = vpack.c.b16 %v274, %v273
        %v303 = vpack.c.b16 %v276, %v275
        %v304 = vpack.c.b16 %v278, %v277
        %v305 = vpack.c.b16 %v280, %v279
        %v306 = vpack.c.b16 %v282, %v281
        %v307 = vpack.c.b16 %v284, %v283
        %v308 = vpack.c.b16 %v286, %v285
        %v309 = vpack.c.b16 %v288, %v287
        %v310 = vpack.c.b16 %v290, %v289
        %v311 = vpack.c.b16 %v292, %v291
        %v312 = vpack.c.b16 %v294, %v293
        %v313 = vpack.c.b16 %v296, %v295
        %v314 = vpack.c.b16 %v298, %v297
        %v317 = vunpack.c.l.b16 %v233
        %v318 = vunpack.c.l.b16 %v234
        %v319 = vpack.c.b16 %v318, %v317
        %vm320 = vcmask 97280
        %v322 = vsel %vm320, %v299, 0
        %v325 = vsel %vm320, %v300, 0
        %v328 = vsel %vm320, %v301, 0
        %v331 = vsel %vm320, %v302, 0
        %v334 = vsel %vm320, %v303, 0
        %v337 = vsel %vm320, %v304, 0
        %v340 = vsel %vm320, %v305, 0
        %v343 = vsel %vm320, %v306, 0
        %v346 = vsel %vm320, %v307, 0
        %v349 = vsel %vm320, %v308, 0
        %v352 = vsel %vm320, %v309, 0
        %v355 = vsel %vm320, %v310, 0
        %v358 = vsel %vm320, %v311, 0
        %v361 = vsel %vm320, %v312, 0
        %v364 = vsel %vm320, %v313, 0
        %v367 = vsel %vm320, %v314, 0
        %vm369 = vcmask 1045504
        %v371 = vsel %vm369, %v319, 0
        %373 = vmatprep.subr.bf16.mxu0 0
        %374 = vmatpush1.bf16.msra.mxu0 %v371
        %375 = vmatprep.subr.bf16.mxu0 0
        %376 = vmatpush1.bf16.msra.mxu0 0
        %377 = vmatprep.subr.bf16.mxu0 0
        %378 = vmatpush1.bf16.msra.mxu0 0
        %379 = vmatprep.subr.bf16.mxu0 0
        %380 = vmatpush1.bf16.msra.mxu0 0
        %381 = vmatprep.subr.bf16.mxu0 0
        %382 = vmatpush1.bf16.msra.mxu0 0
        %383 = vmatprep.subr.bf16.mxu0 0
        %384 = vmatpush1.bf16.msra.mxu0 0
        %385 = vmatprep.subr.bf16.mxu0 0
        %386 = vmatpush1.bf16.msra.mxu0 0
        %387 = vmatprep.subr.bf16.mxu0 0
        %388 = vmatpush1.bf16.msra.mxu0 0
        %389 = vmatprep.subr.bf16.mxu0 0
        %390 = vmatpush1.bf16.msra.mxu0 0
        %391 = vmatprep.subr.bf16.mxu0 0
        %392 = vmatpush1.bf16.msra.mxu0 0
        %393 = vmatprep.subr.bf16.mxu0 0
        %394 = vmatpush1.bf16.msra.mxu0 0
        %395 = vmatprep.subr.bf16.mxu0 0
        %396 = vmatpush1.bf16.msra.mxu0 0
        %397 = vmatprep.subr.bf16.mxu0 0
        %398 = vmatpush1.bf16.msra.mxu0 0
        %399 = vmatprep.subr.bf16.mxu0 0
        %400 = vmatpush1.bf16.msra.mxu0 0
        %401 = vmatprep.subr.bf16.mxu0 0
        %402 = vmatpush1.bf16.msra.mxu0 0
        %403 = vmatprep.subr.bf16.mxu0 0
        %404 = vmatpush1.bf16.msra.mxu0 0
        %405 = vmatprep.mubr.bf16.mxu0 0
        %406 = vmatmul.mubr.bf16.gmra.mrb[0].mxu0 %v322
        %v407 = vpop.f32.mrb[0].mxu0
        %v408 = vadd.f32 0.0, %v407
        %v409 = vpop.f32.mrb[0].mxu0
        %v410 = vpop.f32.mrb[0].mxu0
        %v411 = vadd.f32 0.0, %v410
        %v412 = vpop.f32.mrb[0].mxu0
        %413 = vmatprep.mubr.bf16.mxu0 0
        %414 = vmatmul.mubr.bf16.gmra.mrb[0].mxu0 %v325
        %v415 = vpop.f32.mrb[0].mxu0
        %v416 = vadd.f32 0.0, %v415
        %v417 = vpop.f32.mrb[0].mxu0
        %v418 = vpop.f32.mrb[0].mxu0
        %v419 = vadd.f32 0.0, %v418
        %v420 = vpop.f32.mrb[0].mxu0
        %421 = vmatprep.mubr.bf16.mxu0 0
        %422 = vmatmul.mubr.bf16.gmra.mrb[0].mxu0 %v328
        %v423 = vpop.f32.mrb[0].mxu0
        %v424 = vadd.f32 0.0, %v423
        %v425 = vpop.f32.mrb[0].mxu0
        %v426 = vpop.f32.mrb[0].mxu0
        %v427 = vadd.f32 0.0, %v426
        %v428 = vpop.f32.mrb[0].mxu0
        %429 = vmatprep.mubr.bf16.mxu0 0
        %430 = vmatmul.mubr.bf16.gmra.mrb[0].mxu0 %v331
        %v431 = vpop.f32.mrb[0].mxu0
        %v432 = vadd.f32 0.0, %v431
        %v433 = vpop.f32.mrb[0].mxu0
        %v434 = vpop.f32.mrb[0].mxu0
        %v435 = vadd.f32 0.0, %v434
        %v436 = vpop.f32.mrb[0].mxu0
        %437 = vmatprep.mubr.bf16.mxu0 0
        %438 = vmatmul.mubr.bf16.gmra.mrb[0].mxu0 %v334
        %v439 = vpop.f32.mrb[0].mxu0
        %v440 = vadd.f32 0.0, %v439
        %v441 = vpop.f32.mrb[0].mxu0
        %v442 = vpop.f32.mrb[0].mxu0
        %v443 = vadd.f32 0.0, %v442
        %v444 = vpop.f32.mrb[0].mxu0
        %445 = vmatprep.mubr.bf16.mxu0 0
        %446 = vmatmul.mubr.bf16.gmra.mrb[0].mxu0 %v337
        %v447 = vpop.f32.mrb[0].mxu0
        %v448 = vadd.f32 0.0, %v447
        %v449 = vpop.f32.mrb[0].mxu0
        %v450 = vpop.f32.mrb[0].mxu0
        %v451 = vadd.f32 0.0, %v450
        %v452 = vpop.f32.mrb[0].mxu0
        %453 = vmatprep.mubr.bf16.mxu0 0
        %454 = vmatmul.mubr.bf16.gmra.mrb[0].mxu0 %v340
        %v455 = vpop.f32.mrb[0].mxu0
        %v456 = vadd.f32 0.0, %v455
        %v457 = vpop.f32.mrb[0].mxu0
        %v458 = vpop.f32.mrb[0].mxu0
        %v459 = vadd.f32 0.0, %v458
        %v460 = vpop.f32.mrb[0].mxu0
        %461 = vmatprep.mubr.bf16.mxu0 0
        %462 = vmatmul.mubr.bf16.gmra.mrb[0].mxu0 %v343
        %v463 = vpop.f32.mrb[0].mxu0
        %v464 = vadd.f32 0.0, %v463
        %v465 = vpop.f32.mrb[0].mxu0
        %v466 = vpop.f32.mrb[0].mxu0
        %v467 = vadd.f32 0.0, %v466
        %v468 = vpop.f32.mrb[0].mxu0
        %469 = vmatprep.mubr.bf16.mxu0 0
        %470 = vmatmul.mubr.bf16.gmra.mrb[0].mxu0 %v346
        %v471 = vpop.f32.mrb[0].mxu0
        %v472 = vadd.f32 0.0, %v471
        %v473 = vpop.f32.mrb[0].mxu0
        %v474 = vpop.f32.mrb[0].mxu0
        %v475 = vadd.f32 0.0, %v474
        %v476 = vpop.f32.mrb[0].mxu0
        %477 = vmatprep.mubr.bf16.mxu0 0
        %478 = vmatmul.mubr.bf16.gmra.mrb[0].mxu0 %v349
        %v479 = vpop.f32.mrb[0].mxu0
        %v480 = vadd.f32 0.0, %v479
        %v481 = vpop.f32.mrb[0].mxu0
        %v482 = vpop.f32.mrb[0].mxu0
        %v483 = vadd.f32 0.0, %v482
        %v484 = vpop.f32.mrb[0].mxu0
        %485 = vmatprep.mubr.bf16.mxu0 0
        %486 = vmatmul.mubr.bf16.gmra.mrb[0].mxu0 %v352
        %v487 = vpop.f32.mrb[0].mxu0
        %v488 = vadd.f32 0.0, %v487
        %v489 = vpop.f32.mrb[0].mxu0
        %v490 = vpop.f32.mrb[0].mxu0
        %v491 = vadd.f32 0.0, %v490
        %v492 = vpop.f32.mrb[0].mxu0
        %493 = vmatprep.mubr.bf16.mxu0 0
        %494 = vmatmul.mubr.bf16.gmra.mrb[0].mxu0 %v355
        %v495 = vpop.f32.mrb[0].mxu0
        %v496 = vadd.f32 0.0, %v495
        %v497 = vpop.f32.mrb[0].mxu0
        %v498 = vpop.f32.mrb[0].mxu0
        %v499 = vadd.f32 0.0, %v498
        %v500 = vpop.f32.mrb[0].mxu0
        %501 = vmatprep.mubr.bf16.mxu0 0
        %502 = vmatmul.mubr.bf16.gmra.mrb[0].mxu0 %v358
        %v503 = vpop.f32.mrb[0].mxu0
        %v504 = vadd.f32 0.0, %v503
        %v505 = vpop.f32.mrb[0].mxu0
        %v506 = vpop.f32.mrb[0].mxu0
        %v507 = vadd.f32 0.0, %v506
        %v508 = vpop.f32.mrb[0].mxu0
        %509 = vmatprep.mubr.bf16.mxu0 0
        %510 = vmatmul.mubr.bf16.gmra.mrb[0].mxu0 %v361
        %v511 = vpop.f32.mrb[0].mxu0
        %v512 = vadd.f32 0.0, %v511
        %v513 = vpop.f32.mrb[0].mxu0
        %v514 = vpop.f32.mrb[0].mxu0
        %v515 = vadd.f32 0.0, %v514
        %v516 = vpop.f32.mrb[0].mxu0
        %517 = vmatprep.mubr.bf16.mxu0 0
        %518 = vmatmul.mubr.bf16.gmra.mrb[0].mxu0 %v364
        %v519 = vpop.f32.mrb[0].mxu0
        %v520 = vadd.f32 0.0, %v519
        %v521 = vpop.f32.mrb[0].mxu0
        %v522 = vpop.f32.mrb[0].mxu0
        %v523 = vadd.f32 0.0, %v522
        %v524 = vpop.f32.mrb[0].mxu0
        %525 = vmatprep.mubr.bf16.mxu0 0
        %526 = vmatmul.mubr.bf16.gmra.mrb[0].mxu0 %v367
        %v527 = vpop.f32.mrb[0].mxu0
        %v528 = vadd.f32 0.0, %v527
        %v529 = vpop.f32.mrb[0].mxu0
        %v530 = vpop.f32.mrb[0].mxu0
        %v531 = vadd.f32 0.0, %v530
        %v532 = vpop.f32.mrb[0].mxu0
        %533 = vdwg.mxu0
        %v566 = vunpack.c.l.b16 %v162
        %v567 = vunpack.c.l.b16 %v163
        %v568 = vunpack.c.l.b16 %v164
        %v569 = vunpack.c.l.b16 %v165
        %v570 = vunpack.c.l.b16 %v166
        %v571 = vunpack.c.l.b16 %v167
        %v572 = vunpack.c.l.b16 %v168
        %v573 = vunpack.c.l.b16 %v169
        %v574 = vunpack.c.l.b16 %v170
        %v575 = vunpack.c.l.b16 %v171
        %v576 = vunpack.c.l.b16 %v172
        %v577 = vunpack.c.l.b16 %v173
        %v578 = vunpack.c.l.b16 %v174
        %v579 = vunpack.c.l.b16 %v175
        %v580 = vunpack.c.l.b16 %v176
        %v581 = vunpack.c.l.b16 %v177
        %v582 = vunpack.c.l.b16 %v178
        %v583 = vunpack.c.l.b16 %v179
        %v584 = vunpack.c.l.b16 %v180
        %v585 = vunpack.c.l.b16 %v181
        %v586 = vunpack.c.l.b16 %v182
        %v587 = vunpack.c.l.b16 %v183
        %v588 = vunpack.c.l.b16 %v184
        %v589 = vunpack.c.l.b16 %v185
        %v590 = vunpack.c.l.b16 %v186
        %v591 = vunpack.c.l.b16 %v187
        %v592 = vunpack.c.l.b16 %v188
        %v593 = vunpack.c.l.b16 %v189
        %v594 = vunpack.c.l.b16 %v190
        %v595 = vunpack.c.l.b16 %v191
        %v596 = vunpack.c.l.b16 %v192
        %v597 = vunpack.c.l.b16 %v193
        %v598 = vpack.c.b16 %v567, %v566
        %v599 = vpack.c.b16 %v569, %v568
        %v600 = vpack.c.b16 %v571, %v570
        %v601 = vpack.c.b16 %v573, %v572
        %v602 = vpack.c.b16 %v575, %v574
        %v603 = vpack.c.b16 %v577, %v576
        %v604 = vpack.c.b16 %v579, %v578
        %v605 = vpack.c.b16 %v581, %v580
        %v606 = vpack.c.b16 %v583, %v582
        %v607 = vpack.c.b16 %v585, %v584
        %v608 = vpack.c.b16 %v587, %v586
        %v609 = vpack.c.b16 %v589, %v588
        %v610 = vpack.c.b16 %v591, %v590
        %v611 = vpack.c.b16 %v593, %v592
        %v612 = vpack.c.b16 %v595, %v594
        %v613 = vpack.c.b16 %v597, %v596
        %v616 = vunpack.c.l.b16 %v194
        %v617 = vunpack.c.l.b16 %v195
        %v618 = vpack.c.b16 %v617, %v616
        %v620 = vsel %vm320, %v598, 0
        %v623 = vsel %vm320, %v599, 0
        %v626 = vsel %vm320, %v600, 0
        %v629 = vsel %vm320, %v601, 0
        %v632 = vsel %vm320, %v602, 0
        %v635 = vsel %vm320, %v603, 0
        %v638 = vsel %vm320, %v604, 0
        %v641 = vsel %vm320, %v605, 0
        %v644 = vsel %vm320, %v606, 0
        %v647 = vsel %vm320, %v607, 0
        %v650 = vsel %vm320, %v608, 0
        %v653 = vsel %vm320, %v609, 0
        %v656 = vsel %vm320, %v610, 0
        %v659 = vsel %vm320, %v611, 0
        %v662 = vsel %vm320, %v612, 0
        %v665 = vsel %vm320, %v613, 0
        %v668 = vsel %vm369, %v618, 0
        %670 = vmatprep.subr.bf16.mxu0 0
        %671 = vmatpush1.bf16.msra.mxu0 %v668
        %672 = vmatprep.subr.bf16.mxu0 0
        %673 = vmatpush1.bf16.msra.mxu0 0
        %674 = vmatprep.subr.bf16.mxu0 0
        %675 = vmatpush1.bf16.msra.mxu0 0
        %676 = vmatprep.subr.bf16.mxu0 0
        %677 = vmatpush1.bf16.msra.mxu0 0
        %678 = vmatprep.subr.bf16.mxu0 0
        %679 = vmatpush1.bf16.msra.mxu0 0
        %680 = vmatprep.subr.bf16.mxu0 0
        %681 = vmatpush1.bf16.msra.mxu0 0
        %682 = vmatprep.subr.bf16.mxu0 0
        %683 = vmatpush1.bf16.msra.mxu0 0
        %684 = vmatprep.subr.bf16.mxu0 0
        %685 = vmatpush1.bf16.msra.mxu0 0
        %686 = vmatprep.subr.bf16.mxu0 0
        %687 = vmatpush1.bf16.msra.mxu0 0
        %688 = vmatprep.subr.bf16.mxu0 0
        %689 = vmatpush1.bf16.msra.mxu0 0
        %690 = vmatprep.subr.bf16.mxu0 0
        %691 = vmatpush1.bf16.msra.mxu0 0
        %692 = vmatprep.subr.bf16.mxu0 0
        %693 = vmatpush1.bf16.msra.mxu0 0
        %694 = vmatprep.subr.bf16.mxu0 0
        %695 = vmatpush1.bf16.msra.mxu0 0
        %696 = vmatprep.subr.bf16.mxu0 0
        %697 = vmatpush1.bf16.msra.mxu0 0
        %698 = vmatprep.subr.bf16.mxu0 0
        %699 = vmatpush1.bf16.msra.mxu0 0
        %700 = vmatprep.subr.bf16.mxu0 0
        %701 = vmatpush1.bf16.msra.mxu0 0
        %702 = vmatprep.mubr.bf16.mxu0 0
        %703 = vmatmul.mubr.bf16.gmra.mrb[0].mxu0 %v620
        %v704 = vpop.f32.mrb[0].mxu0
        %v705 = vadd.f32 %v408, %v704
        %v706 = vpop.f32.mrb[0].mxu0
        %v707 = vpop.f32.mrb[0].mxu0
        %v708 = vadd.f32 %v411, %v707
        %v709 = vpop.f32.mrb[0].mxu0
        %710 = vmatprep.mubr.bf16.mxu0 0
        %711 = vmatmul.mubr.bf16.gmra.mrb[0].mxu0 %v623
        %v712 = vpop.f32.mrb[0].mxu0
        %v713 = vadd.f32 %v416, %v712
        %v714 = vpop.f32.mrb[0].mxu0
        %v715 = vpop.f32.mrb[0].mxu0
        %v716 = vadd.f32 %v419, %v715
        %v717 = vpop.f32.mrb[0].mxu0
        %718 = vmatprep.mubr.bf16.mxu0 0
        %719 = vmatmul.mubr.bf16.gmra.mrb[0].mxu0 %v626
        %v720 = vpop.f32.mrb[0].mxu0
        %v721 = vadd.f32 %v424, %v720
        %v722 = vpop.f32.mrb[0].mxu0
        %v723 = vpop.f32.mrb[0].mxu0
        %v724 = vadd.f32 %v427, %v723
        %v725 = vpop.f32.mrb[0].mxu0
        %726 = vmatprep.mubr.bf16.mxu0 0
        %727 = vmatmul.mubr.bf16.gmra.mrb[0].mxu0 %v629
        %v728 = vpop.f32.mrb[0].mxu0
        %v729 = vadd.f32 %v432, %v728
        %v730 = vpop.f32.mrb[0].mxu0
        %v731 = vpop.f32.mrb[0].mxu0
        %v732 = vadd.f32 %v435, %v731
        %v733 = vpop.f32.mrb[0].mxu0
        %734 = vmatprep.mubr.bf16.mxu0 0
        %735 = vmatmul.mubr.bf16.gmra.mrb[0].mxu0 %v632
        %v736 = vpop.f32.mrb[0].mxu0
        %v737 = vadd.f32 %v440, %v736
        %v738 = vpop.f32.mrb[0].mxu0
        %v739 = vpop.f32.mrb[0].mxu0
        %v740 = vadd.f32 %v443, %v739
        %v741 = vpop.f32.mrb[0].mxu0
        %742 = vmatprep.mubr.bf16.mxu0 0
        %743 = vmatmul.mubr.bf16.gmra.mrb[0].mxu0 %v635
        %v744 = vpop.f32.mrb[0].mxu0
        %v745 = vadd.f32 %v448, %v744
        %v746 = vpop.f32.mrb[0].mxu0
        %v747 = vpop.f32.mrb[0].mxu0
        %v748 = vadd.f32 %v451, %v747
        %v749 = vpop.f32.mrb[0].mxu0
        %750 = vmatprep.mubr.bf16.mxu0 0
        %751 = vmatmul.mubr.bf16.gmra.mrb[0].mxu0 %v638
        %v752 = vpop.f32.mrb[0].mxu0
        %v753 = vadd.f32 %v456, %v752
        %v754 = vpop.f32.mrb[0].mxu0
        %v755 = vpop.f32.mrb[0].mxu0
        %v756 = vadd.f32 %v459, %v755
        %v757 = vpop.f32.mrb[0].mxu0
        %758 = vmatprep.mubr.bf16.mxu0 0
        %759 = vmatmul.mubr.bf16.gmra.mrb[0].mxu0 %v641
        %v760 = vpop.f32.mrb[0].mxu0
        %v761 = vadd.f32 %v464, %v760
        %v762 = vpop.f32.mrb[0].mxu0
        %v763 = vpop.f32.mrb[0].mxu0
        %v764 = vadd.f32 %v467, %v763
        %v765 = vpop.f32.mrb[0].mxu0
        %766 = vmatprep.mubr.bf16.mxu0 0
        %767 = vmatmul.mubr.bf16.gmra.mrb[0].mxu0 %v644
        %v768 = vpop.f32.mrb[0].mxu0
        %v769 = vadd.f32 %v472, %v768
        %v770 = vpop.f32.mrb[0].mxu0
        %v771 = vpop.f32.mrb[0].mxu0
        %v772 = vadd.f32 %v475, %v771
        %v773 = vpop.f32.mrb[0].mxu0
        %774 = vmatprep.mubr.bf16.mxu0 0
        %775 = vmatmul.mubr.bf16.gmra.mrb[0].mxu0 %v647
        %v776 = vpop.f32.mrb[0].mxu0
        %v777 = vadd.f32 %v480, %v776
        %v778 = vpop.f32.mrb[0].mxu0
        %v779 = vpop.f32.mrb[0].mxu0
        %v780 = vadd.f32 %v483, %v779
        %v781 = vpop.f32.mrb[0].mxu0
        %782 = vmatprep.mubr.bf16.mxu0 0
        %783 = vmatmul.mubr.bf16.gmra.mrb[0].mxu0 %v650
        %v784 = vpop.f32.mrb[0].mxu0
        %v785 = vadd.f32 %v488, %v784
        %v786 = vpop.f32.mrb[0].mxu0
        %v787 = vpop.f32.mrb[0].mxu0
        %v788 = vadd.f32 %v491, %v787
        %v789 = vpop.f32.mrb[0].mxu0
        %790 = vmatprep.mubr.bf16.mxu0 0
        %791 = vmatmul.mubr.bf16.gmra.mrb[0].mxu0 %v653
        %v792 = vpop.f32.mrb[0].mxu0
        %v793 = vadd.f32 %v496, %v792
        %v794 = vpop.f32.mrb[0].mxu0
        %v795 = vpop.f32.mrb[0].mxu0
        %v796 = vadd.f32 %v499, %v795
        %v797 = vpop.f32.mrb[0].mxu0
        %798 = vmatprep.mubr.bf16.mxu0 0
        %799 = vmatmul.mubr.bf16.gmra.mrb[0].mxu0 %v656
        %v800 = vpop.f32.mrb[0].mxu0
        %v801 = vadd.f32 %v504, %v800
        %v802 = vpop.f32.mrb[0].mxu0
        %v803 = vpop.f32.mrb[0].mxu0
        %v804 = vadd.f32 %v507, %v803
        %v805 = vpop.f32.mrb[0].mxu0
        %806 = vmatprep.mubr.bf16.mxu0 0
        %807 = vmatmul.mubr.bf16.gmra.mrb[0].mxu0 %v659
        %v808 = vpop.f32.mrb[0].mxu0
        %v809 = vadd.f32 %v512, %v808
        %v810 = vpop.f32.mrb[0].mxu0
        %v811 = vpop.f32.mrb[0].mxu0
        %v812 = vadd.f32 %v515, %v811
        %v813 = vpop.f32.mrb[0].mxu0
        %814 = vmatprep.mubr.bf16.mxu0 0
        %815 = vmatmul.mubr.bf16.gmra.mrb[0].mxu0 %v662
        %v816 = vpop.f32.mrb[0].mxu0
        %v817 = vadd.f32 %v520, %v816
        %v818 = vpop.f32.mrb[0].mxu0
        %v819 = vpop.f32.mrb[0].mxu0
        %v820 = vadd.f32 %v523, %v819
        %v821 = vpop.f32.mrb[0].mxu0
        %822 = vmatprep.mubr.bf16.mxu0 0
        %823 = vmatmul.mubr.bf16.gmra.mrb[0].mxu0 %v665
        %v824 = vpop.f32.mrb[0].mxu0
        %v825 = vadd.f32 %v528, %v824
        %v826 = vpop.f32.mrb[0].mxu0
        %v827 = vpop.f32.mrb[0].mxu0
        %v828 = vadd.f32 %v531, %v827
        %v829 = vpop.f32.mrb[0].mxu0
        %830 = vdwg.mxu0
        %s831 = sadd.s32 %s158, 2
        %s832 = smul.u32 %s831, 2
        %s833 = smul.addr %s832, 4
        %s834 = scalar_lea.vmem %s155, %s833
        %v835 = vld [vmem:[%s834] sm:$0xf]
        %v836 = vld [vmem:[%s834 + $0x4] sm:$0xf]
        %v837 = vld [vmem:[%s834 + $0x8] sm:$0xf]
        %v838 = vld [vmem:[%s834 + $0xc] sm:$0xf]
        %v839 = vld [vmem:[%s834 + $0x10] sm:$0xf]
        %v840 = vld [vmem:[%s834 + $0x14] sm:$0xf]
        %v841 = vld [vmem:[%s834 + $0x18] sm:$0xf]
        %v842 = vld [vmem:[%s834 + $0x1c] sm:$0xf]
        %v843 = vld [vmem:[%s834 + $0x20] sm:$0xf]
        %v844 = vld [vmem:[%s834 + $0x24] sm:$0xf]
        %v845 = vld [vmem:[%s834 + $0x28] sm:$0xf]
        %v846 = vld [vmem:[%s834 + $0x2c] sm:$0xf]
        %v847 = vld [vmem:[%s834 + $0x30] sm:$0xf]
        %v848 = vld [vmem:[%s834 + $0x34] sm:$0xf]
        %v849 = vld [vmem:[%s834 + $0x38] sm:$0xf]
        %v850 = vld [vmem:[%s834 + $0x3c] sm:$0xf]
        %v851 = vld [vmem:[%s834 + $0x40] sm:$0xf]
        %v852 = vld [vmem:[%s834 + $0x44] sm:$0xf]
        %v853 = vld [vmem:[%s834 + $0x48] sm:$0xf]
        %v854 = vld [vmem:[%s834 + $0x4c] sm:$0xf]
        %v855 = vld [vmem:[%s834 + $0x50] sm:$0xf]
        %v856 = vld [vmem:[%s834 + $0x54] sm:$0xf]
        %v857 = vld [vmem:[%s834 + $0x58] sm:$0xf]
        %v858 = vld [vmem:[%s834 + $0x5c] sm:$0xf]
        %v859 = vld [vmem:[%s834 + $0x60] sm:$0xf]
        %v860 = vld [vmem:[%s834 + $0x64] sm:$0xf]
        %v861 = vld [vmem:[%s834 + $0x68] sm:$0xf]
        %v862 = vld [vmem:[%s834 + $0x6c] sm:$0xf]
        %v863 = vld [vmem:[%s834 + $0x70] sm:$0xf]
        %v864 = vld [vmem:[%s834 + $0x74] sm:$0xf]
        %v865 = vld [vmem:[%s834 + $0x78] sm:$0xf]
        %v866 = vld [vmem:[%s834 + $0x7c] sm:$0xf]
        %s867 = scalar_lea.vmem %s1, 16
        %v868 = vld [vmem:[%s867] sm:$0xf]
        %v869 = vld [vmem:[%s867 + $0x4] sm:$0x3]
        %v902 = vunpack.c.l.b16 %v835
        %v903 = vunpack.c.l.b16 %v836
        %v904 = vunpack.c.l.b16 %v837
        %v905 = vunpack.c.l.b16 %v838
        %v906 = vunpack.c.l.b16 %v839
        %v907 = vunpack.c.l.b16 %v840
        %v908 = vunpack.c.l.b16 %v841
        %v909 = vunpack.c.l.b16 %v842
        %v910 = vunpack.c.l.b16 %v843
        %v911 = vunpack.c.l.b16 %v844
        %v912 = vunpack.c.l.b16 %v845
        %v913 = vunpack.c.l.b16 %v846
        %v914 = vunpack.c.l.b16 %v847
        %v915 = vunpack.c.l.b16 %v848
        %v916 = vunpack.c.l.b16 %v849
        %v917 = vunpack.c.l.b16 %v850
        %v918 = vunpack.c.l.b16 %v851
        %v919 = vunpack.c.l.b16 %v852
        %v920 = vunpack.c.l.b16 %v853
        %v921 = vunpack.c.l.b16 %v854
        %v922 = vunpack.c.l.b16 %v855
        %v923 = vunpack.c.l.b16 %v856
        %v924 = vunpack.c.l.b16 %v857
        %v925 = vunpack.c.l.b16 %v858
        %v926 = vunpack.c.l.b16 %v859
        %v927 = vunpack.c.l.b16 %v860
        %v928 = vunpack.c.l.b16 %v861
        %v929 = vunpack.c.l.b16 %v862
        %v930 = vunpack.c.l.b16 %v863
        %v931 = vunpack.c.l.b16 %v864
        %v932 = vunpack.c.l.b16 %v865
        %v933 = vunpack.c.l.b16 %v866
        %v934 = vpack.c.b16 %v903, %v902
        %v935 = vpack.c.b16 %v905, %v904
        %v936 = vpack.c.b16 %v907, %v906
        %v937 = vpack.c.b16 %v909, %v908
        %v938 = vpack.c.b16 %v911, %v910
        %v939 = vpack.c.b16 %v913, %v912
        %v940 = vpack.c.b16 %v915, %v914
        %v941 = vpack.c.b16 %v917, %v916
        %v942 = vpack.c.b16 %v919, %v918
        %v943 = vpack.c.b16 %v921, %v920
        %v944 = vpack.c.b16 %v923, %v922
        %v945 = vpack.c.b16 %v925, %v924
        %v946 = vpack.c.b16 %v927, %v926
        %v947 = vpack.c.b16 %v929, %v928
        %v948 = vpack.c.b16 %v931, %v930
        %v949 = vpack.c.b16 %v933, %v932
        %v952 = vunpack.c.l.b16 %v868
        %v953 = vunpack.c.l.b16 %v869
        %v954 = vpack.c.b16 %v953, %v952
        %v956 = vsel %vm320, %v934, 0
        %v959 = vsel %vm320, %v935, 0
        %v962 = vsel %vm320, %v936, 0
        %v965 = vsel %vm320, %v937, 0
        %v968 = vsel %vm320, %v938, 0
        %v971 = vsel %vm320, %v939, 0
        %v974 = vsel %vm320, %v940, 0
        %v977 = vsel %vm320, %v941, 0
        %v980 = vsel %vm320, %v942, 0
        %v983 = vsel %vm320, %v943, 0
        %v986 = vsel %vm320, %v944, 0
        %v989 = vsel %vm320, %v945, 0
        %v992 = vsel %vm320, %v946, 0
        %v995 = vsel %vm320, %v947, 0
        %v998 = vsel %vm320, %v948, 0
        %v1001 = vsel %vm320, %v949, 0
        %v1004 = vsel %vm369, %v954, 0
        %1006 = vmatprep.subr.bf16.mxu0 0
        %1007 = vmatpush1.bf16.msra.mxu0 %v1004
        %1008 = vmatprep.subr.bf16.mxu0 0
        %1009 = vmatpush1.bf16.msra.mxu0 0
        %1010 = vmatprep.subr.bf16.mxu0 0
        %1011 = vmatpush1.bf16.msra.mxu0 0
        %1012 = vmatprep.subr.bf16.mxu0 0
        %1013 = vmatpush1.bf16.msra.mxu0 0
        %1014 = vmatprep.subr.bf16.mxu0 0
        %1015 = vmatpush1.bf16.msra.mxu0 0
        %1016 = vmatprep.subr.bf16.mxu0 0
        %1017 = vmatpush1.bf16.msra.mxu0 0
        %1018 = vmatprep.subr.bf16.mxu0 0
        %1019 = vmatpush1.bf16.msra.mxu0 0
        %1020 = vmatprep.subr.bf16.mxu0 0
        %1021 = vmatpush1.bf16.msra.mxu0 0
        %1022 = vmatprep.subr.bf16.mxu0 0
        %1023 = vmatpush1.bf16.msra.mxu0 0
        %1024 = vmatprep.subr.bf16.mxu0 0
        %1025 = vmatpush1.bf16.msra.mxu0 0
        %1026 = vmatprep.subr.bf16.mxu0 0
        %1027 = vmatpush1.bf16.msra.mxu0 0
        %1028 = vmatprep.subr.bf16.mxu0 0
        %1029 = vmatpush1.bf16.msra.mxu0 0
        %1030 = vmatprep.subr.bf16.mxu0 0
        %1031 = vmatpush1.bf16.msra.mxu0 0
        %1032 = vmatprep.subr.bf16.mxu0 0
        %1033 = vmatpush1.bf16.msra.mxu0 0
        %1034 = vmatprep.subr.bf16.mxu0 0
        %1035 = vmatpush1.bf16.msra.mxu0 0
        %1036 = vmatprep.subr.bf16.mxu0 0
        %1037 = vmatpush1.bf16.msra.mxu0 0
        %1038 = vmatprep.mubr.bf16.mxu0 0
        %1039 = vmatmul.mubr.bf16.gmra.mrb[0].mxu0 %v956
        %v1040 = vpop.f32.mrb[0].mxu0
        %v1041 = vadd.f32 0.0, %v1040
        %v1042 = vpop.f32.mrb[0].mxu0
        %v1043 = vpop.f32.mrb[0].mxu0
        %v1044 = vadd.f32 0.0, %v1043
        %v1045 = vpop.f32.mrb[0].mxu0
        %1046 = vmatprep.mubr.bf16.mxu0 0
        %1047 = vmatmul.mubr.bf16.gmra.mrb[0].mxu0 %v959
        %v1048 = vpop.f32.mrb[0].mxu0
        %v1049 = vadd.f32 0.0, %v1048
        %v1050 = vpop.f32.mrb[0].mxu0
        %v1051 = vpop.f32.mrb[0].mxu0
        %v1052 = vadd.f32 0.0, %v1051
        %v1053 = vpop.f32.mrb[0].mxu0
        %1054 = vmatprep.mubr.bf16.mxu0 0
        %1055 = vmatmul.mubr.bf16.gmra.mrb[0].mxu0 %v962
        %v1056 = vpop.f32.mrb[0].mxu0
        %v1057 = vadd.f32 0.0, %v1056
        %v1058 = vpop.f32.mrb[0].mxu0
        %v1059 = vpop.f32.mrb[0].mxu0
        %v1060 = vadd.f32 0.0, %v1059
        %v1061 = vpop.f32.mrb[0].mxu0
        %1062 = vmatprep.mubr.bf16.mxu0 0
        %1063 = vmatmul.mubr.bf16.gmra.mrb[0].mxu0 %v965
        %v1064 = vpop.f32.mrb[0].mxu0
        %v1065 = vadd.f32 0.0, %v1064
        %v1066 = vpop.f32.mrb[0].mxu0
        %v1067 = vpop.f32.mrb[0].mxu0
        %v1068 = vadd.f32 0.0, %v1067
        %v1069 = vpop.f32.mrb[0].mxu0
        %1070 = vmatprep.mubr.bf16.mxu0 0
        %1071 = vmatmul.mubr.bf16.gmra.mrb[0].mxu0 %v968
        %v1072 = vpop.f32.mrb[0].mxu0
        %v1073 = vadd.f32 0.0, %v1072
        %v1074 = vpop.f32.mrb[0].mxu0
        %v1075 = vpop.f32.mrb[0].mxu0
        %v1076 = vadd.f32 0.0, %v1075
        %v1077 = vpop.f32.mrb[0].mxu0
        %1078 = vmatprep.mubr.bf16.mxu0 0
        %1079 = vmatmul.mubr.bf16.gmra.mrb[0].mxu0 %v971
        %v1080 = vpop.f32.mrb[0].mxu0
        %v1081 = vadd.f32 0.0, %v1080
        %v1082 = vpop.f32.mrb[0].mxu0
        %v1083 = vpop.f32.mrb[0].mxu0
        %v1084 = vadd.f32 0.0, %v1083
        %v1085 = vpop.f32.mrb[0].mxu0
        %1086 = vmatprep.mubr.bf16.mxu0 0
        %1087 = vmatmul.mubr.bf16.gmra.mrb[0].mxu0 %v974
        %v1088 = vpop.f32.mrb[0].mxu0
        %v1089 = vadd.f32 0.0, %v1088
        %v1090 = vpop.f32.mrb[0].mxu0
        %v1091 = vpop.f32.mrb[0].mxu0
        %v1092 = vadd.f32 0.0, %v1091
        %v1093 = vpop.f32.mrb[0].mxu0
        %1094 = vmatprep.mubr.bf16.mxu0 0
        %1095 = vmatmul.mubr.bf16.gmra.mrb[0].mxu0 %v977
        %v1096 = vpop.f32.mrb[0].mxu0
        %v1097 = vadd.f32 0.0, %v1096
        %v1098 = vpop.f32.mrb[0].mxu0
        %v1099 = vpop.f32.mrb[0].mxu0
        %v1100 = vadd.f32 0.0, %v1099
        %v1101 = vpop.f32.mrb[0].mxu0
        %1102 = vmatprep.mubr.bf16.mxu0 0
        %1103 = vmatmul.mubr.bf16.gmra.mrb[0].mxu0 %v980
        %v1104 = vpop.f32.mrb[0].mxu0
        %v1105 = vadd.f32 0.0, %v1104
        %v1106 = vpop.f32.mrb[0].mxu0
        %v1107 = vpop.f32.mrb[0].mxu0
        %v1108 = vadd.f32 0.0, %v1107
        %v1109 = vpop.f32.mrb[0].mxu0
        %1110 = vmatprep.mubr.bf16.mxu0 0
        %1111 = vmatmul.mubr.bf16.gmra.mrb[0].mxu0 %v983
        %v1112 = vpop.f32.mrb[0].mxu0
        %v1113 = vadd.f32 0.0, %v1112
        %v1114 = vpop.f32.mrb[0].mxu0
        %v1115 = vpop.f32.mrb[0].mxu0
        %v1116 = vadd.f32 0.0, %v1115
        %v1117 = vpop.f32.mrb[0].mxu0
        %1118 = vmatprep.mubr.bf16.mxu0 0
        %1119 = vmatmul.mubr.bf16.gmra.mrb[0].mxu0 %v986
        %v1120 = vpop.f32.mrb[0].mxu0
        %v1121 = vadd.f32 0.0, %v1120
        %v1122 = vpop.f32.mrb[0].mxu0
        %v1123 = vpop.f32.mrb[0].mxu0
        %v1124 = vadd.f32 0.0, %v1123
        %v1125 = vpop.f32.mrb[0].mxu0
        %1126 = vmatprep.mubr.bf16.mxu0 0
        %1127 = vmatmul.mubr.bf16.gmra.mrb[0].mxu0 %v989
        %v1128 = vpop.f32.mrb[0].mxu0
        %v1129 = vadd.f32 0.0, %v1128
        %v1130 = vpop.f32.mrb[0].mxu0
        %v1131 = vpop.f32.mrb[0].mxu0
        %v1132 = vadd.f32 0.0, %v1131
        %v1133 = vpop.f32.mrb[0].mxu0
        %1134 = vmatprep.mubr.bf16.mxu0 0
        %1135 = vmatmul.mubr.bf16.gmra.mrb[0].mxu0 %v992
        %v1136 = vpop.f32.mrb[0].mxu0
        %v1137 = vadd.f32 0.0, %v1136
        %v1138 = vpop.f32.mrb[0].mxu0
        %v1139 = vpop.f32.mrb[0].mxu0
        %v1140 = vadd.f32 0.0, %v1139
        %v1141 = vpop.f32.mrb[0].mxu0
        %1142 = vmatprep.mubr.bf16.mxu0 0
        %1143 = vmatmul.mubr.bf16.gmra.mrb[0].mxu0 %v995
        %v1144 = vpop.f32.mrb[0].mxu0
        %v1145 = vadd.f32 0.0, %v1144
        %v1146 = vpop.f32.mrb[0].mxu0
        %v1147 = vpop.f32.mrb[0].mxu0
        %v1148 = vadd.f32 0.0, %v1147
        %v1149 = vpop.f32.mrb[0].mxu0
        %1150 = vmatprep.mubr.bf16.mxu0 0
        %1151 = vmatmul.mubr.bf16.gmra.mrb[0].mxu0 %v998
        %v1152 = vpop.f32.mrb[0].mxu0
        %v1153 = vadd.f32 0.0, %v1152
        %v1154 = vpop.f32.mrb[0].mxu0
        %v1155 = vpop.f32.mrb[0].mxu0
        %v1156 = vadd.f32 0.0, %v1155
        %v1157 = vpop.f32.mrb[0].mxu0
        %1158 = vmatprep.mubr.bf16.mxu0 0
        %1159 = vmatmul.mubr.bf16.gmra.mrb[0].mxu0 %v1001
        %v1160 = vpop.f32.mrb[0].mxu0
        %v1161 = vadd.f32 0.0, %v1160
        %v1162 = vpop.f32.mrb[0].mxu0
        %v1163 = vpop.f32.mrb[0].mxu0
        %v1164 = vadd.f32 0.0, %v1163
        %v1165 = vpop.f32.mrb[0].mxu0
        %1166 = vdwg.mxu0
        %v1167 = vadd.f32 %v705, %v1041
        %v1168 = vadd.f32 %v708, %v1044
        %v1169 = vadd.f32 %v713, %v1049
        %v1170 = vadd.f32 %v716, %v1052
        %v1171 = vadd.f32 %v721, %v1057
        %v1172 = vadd.f32 %v724, %v1060
        %v1173 = vadd.f32 %v729, %v1065
        %v1174 = vadd.f32 %v732, %v1068
        %v1175 = vadd.f32 %v737, %v1073
        %v1176 = vadd.f32 %v740, %v1076
        %v1177 = vadd.f32 %v745, %v1081
        %v1178 = vadd.f32 %v748, %v1084
        %v1179 = vadd.f32 %v753, %v1089
        %v1180 = vadd.f32 %v756, %v1092
        %v1181 = vadd.f32 %v761, %v1097
        %v1182 = vadd.f32 %v764, %v1100
        %v1183 = vadd.f32 %v769, %v1105
        %v1184 = vadd.f32 %v772, %v1108
        %v1185 = vadd.f32 %v777, %v1113
        %v1186 = vadd.f32 %v780, %v1116
        %v1187 = vadd.f32 %v785, %v1121
        %v1188 = vadd.f32 %v788, %v1124
        %v1189 = vadd.f32 %v793, %v1129
        %v1190 = vadd.f32 %v796, %v1132
        %v1191 = vadd.f32 %v801, %v1137
        %v1192 = vadd.f32 %v804, %v1140
        %v1193 = vadd.f32 %v809, %v1145
        %v1194 = vadd.f32 %v812, %v1148
        %v1195 = vadd.f32 %v817, %v1153
        %v1196 = vadd.f32 %v820, %v1156
        %v1197 = vadd.f32 %v825, %v1161
        %v1198 = vadd.f32 %v828, %v1164
        %v1199 = vmax.f32 %v1167, 0.0
        %v1200 = vmax.f32 %v1168, 0.0
        %v1201 = vmax.f32 %v1169, 0.0
        %v1202 = vmax.f32 %v1170, 0.0
        %v1203 = vmax.f32 %v1171, 0.0
        %v1204 = vmax.f32 %v1172, 0.0
        %v1205 = vmax.f32 %v1173, 0.0
        %v1206 = vmax.f32 %v1174, 0.0
        %v1207 = vmax.f32 %v1175, 0.0
        %v1208 = vmax.f32 %v1176, 0.0
        %v1209 = vmax.f32 %v1177, 0.0
        %v1210 = vmax.f32 %v1178, 0.0
        %v1211 = vmax.f32 %v1179, 0.0
        %v1212 = vmax.f32 %v1180, 0.0
        %v1213 = vmax.f32 %v1181, 0.0
        %v1214 = vmax.f32 %v1182, 0.0
        %v1215 = vmax.f32 %v1183, 0.0
        %v1216 = vmax.f32 %v1184, 0.0
        %v1217 = vmax.f32 %v1185, 0.0
        %v1218 = vmax.f32 %v1186, 0.0
        %v1219 = vmax.f32 %v1187, 0.0
        %v1220 = vmax.f32 %v1188, 0.0
        %v1221 = vmax.f32 %v1189, 0.0
        %v1222 = vmax.f32 %v1190, 0.0
        %v1223 = vmax.f32 %v1191, 0.0
        %v1224 = vmax.f32 %v1192, 0.0
        %v1225 = vmax.f32 %v1193, 0.0
        %v1226 = vmax.f32 %v1194, 0.0
        %v1227 = vmax.f32 %v1195, 0.0
        %v1228 = vmax.f32 %v1196, 0.0
        %v1229 = vmax.f32 %v1197, 0.0
        %v1230 = vmax.f32 %v1198, 0.0
        %1231 = vst [vmem:[%s150] sm:$0xff] %v1199
        %1232 = vst [vmem:[%s150 + $0x8] sm:$0xff] %v1200
        %1233 = vst [vmem:[%s150 + $0x10] sm:$0xff] %v1201
        %1234 = vst [vmem:[%s150 + $0x18] sm:$0xff] %v1202
        %1235 = vst [vmem:[%s150 + $0x20] sm:$0xff] %v1203
        %1236 = vst [vmem:[%s150 + $0x28] sm:$0xff] %v1204
        %1237 = vst [vmem:[%s150 + $0x30] sm:$0xff] %v1205
        %1238 = vst [vmem:[%s150 + $0x38] sm:$0xff] %v1206
        %1239 = vst [vmem:[%s150 + $0x40] sm:$0xff] %v1207
        %1240 = vst [vmem:[%s150 + $0x48] sm:$0xff] %v1208
        %1241 = vst [vmem:[%s150 + $0x50] sm:$0xff] %v1209
        %1242 = vst [vmem:[%s150 + $0x58] sm:$0xff] %v1210
        %1243 = vst [vmem:[%s150 + $0x60] sm:$0xff] %v1211
        %1244 = vst [vmem:[%s150 + $0x68] sm:$0xff] %v1212
        %1245 = vst [vmem:[%s150 + $0x70] sm:$0xff] %v1213
        %1246 = vst [vmem:[%s150 + $0x78] sm:$0xff] %v1214
        %1247 = vst [vmem:[%s150 + $0x80] sm:$0xff] %v1215
        %1248 = vst [vmem:[%s150 + $0x88] sm:$0xff] %v1216
        %1249 = vst [vmem:[%s150 + $0x90] sm:$0xff] %v1217
        %1250 = vst [vmem:[%s150 + $0x98] sm:$0xff] %v1218
        %1251 = vst [vmem:[%s150 + $0xa0] sm:$0xff] %v1219
        %1252 = vst [vmem:[%s150 + $0xa8] sm:$0xff] %v1220
        %1253 = vst [vmem:[%s150 + $0xb0] sm:$0xff] %v1221
        %1254 = vst [vmem:[%s150 + $0xb8] sm:$0xff] %v1222
        %1255 = vst [vmem:[%s150 + $0xc0] sm:$0xff] %v1223
        %1256 = vst [vmem:[%s150 + $0xc8] sm:$0xff] %v1224
        %1257 = vst [vmem:[%s150 + $0xd0] sm:$0xff] %v1225
        %1258 = vst [vmem:[%s150 + $0xd8] sm:$0xff] %v1226
        %1259 = vst [vmem:[%s150 + $0xe0] sm:$0xff] %v1227
        %1260 = vst [vmem:[%s150 + $0xe8] sm:$0xff] %v1228
        %1261 = vst [vmem:[%s150 + $0xf0] sm:$0xff] %v1229
        %1262 = vst [vmem:[%s150 + $0xf8] sm:$0xff] %v1230
        %s1263 = sand.u32 %s85, 1
        %s1264 = scalar_lea.sflag [#allocation3], %s1263
        %s1265 = sand.u32 %s85, 1
        %s1266 = smul.addr %s1265, 256
        %s1267 = scalar_lea.vmem [#allocation2], %s1266
        // Predicated region
        $region29: #{tpu_custom_call.1} parent=27 // pred_check
          %p1268 = pneg %p95
        $region30: #{tpu_custom_call.1} parent=27 // pred_check_branch
          %1270 = sbr.rel (%p1268) target = $region32
        $region31: #{tpu_custom_call.1} parent=27 // pred_region
          %s1271 = smul.u32 16, %s21
          %s1273 = ssub.s32 4096, 4096
          %1274 = vsyncadd %s1264, %s1273
          %s1275 = smul.addr %s1271, 2
          %s1276 = smul.addr %s20, 32
          %s1277 = sadd.s32 %s1275, %s1276
          %s1278 = smul.addr %s1277, 128
          %s1279 = scalar_lea.hbm %s2, %s1278
          %s1280 = sshll.u32 %s1267, 4
          %s1281 = int_to_ptr.vmem [resolvable:$true] %s1280
          %1286 = dma.vmem_to_hbm [thread:$0]  %s1281, 4096, %s1279, %s1264, 128, 128, 8
        $region32: #{tpu_custom_call.1} parent=27 // pred_fallthru
          _
      $region28: #{tpu_custom_call.1} parent=5 // pred_fallthru
        _
      %p1287 = scmp.le.s32.totalorder 2, %s11
      // Predicated region
      $region33: #{tpu_custom_call.1} parent=5 // pred_check
        %p1288 = pneg %p1287
      $region34: #{tpu_custom_call.1} parent=5 // pred_check_branch
        %1290 = sbr.rel (%p1288) target = $region36
      $region35: #{tpu_custom_call.1} parent=5 // pred_region
        %s1291 = ssub.s32 %s11, 2
        // Predicated region
        $region37: #{tpu_custom_call.1} parent=35 // pred_check
          %p1292 = pneg %p101
        $region38: #{tpu_custom_call.1} parent=35 // pred_check_branch
          %1294 = sbr.rel (%p1292) target = $region40
        $region39: #{tpu_custom_call.1} parent=35 // pred_region
          %s1295 = sand.u32 %s86, 1
          %s1296 = scalar_lea.sflag [#allocation3], %s1295
          %s1297 = sand.u32 %s86, 1
          %s1298 = smul.addr %s1297, 256
          %s1299 = scalar_lea.vmem [#allocation2], %s1298
          %1300 = dma.done %s1296, 4096
        $region40: #{tpu_custom_call.1} parent=35 // pred_fallthru
          _
      $region36: #{tpu_custom_call.1} parent=5 // pred_fallthru
        _
    $region6: #{tpu_custom_call.1} parent=1 // loop_footer
      %s15 = sadd.s32 1, %s11
    $region7: #{tpu_custom_call.1} parent=1 // loop_footer_branch
      %10 = sbr.rel target = $region3
    $region8: #{tpu_custom_call.1} parent=1 // loop_exit
      _
    %1301 = vsyncpa [#allocation3], 1
    %s1302 = scalar_lea.sflag [#allocation3], 1
    %1303 = vsyncpa %s1302, 1

</llo_original>
